<compile_context>
chip_gen: v7x
topology: tpu7x:2x2x1
jax: 0.10.0
libtpu: 0.0.40
codegen_flags: <defaults>
</compile_context>

<pallas_src>
import functools
import math

import jax
import jax.numpy as jnp
from jax.experimental import pallas as pl
from jax.experimental.pallas import tpu as pltpu


def _round_up(x, m):
    return ((x + m - 1) // m) * m


# 8 MiB residency budget for XW (double-buffered by Pallas -> ~16 MiB VMEM),
# safe on v7x's 64 MiB physical VMEM together with the A tiles.
_XW_RESIDENT_BYTES = 8 * 1024 * 1024


# ---------------------------------------------------------------------------
# Kernel 1: feature projection  XW = X @ W  (tiny matmul, hoisted per layer)
# ---------------------------------------------------------------------------
def project_kernel(x_ref, w_ref, o_ref):
    o_ref[...] = jnp.dot(
        x_ref[...], w_ref[...], preferred_element_type=jnp.float32
    ).astype(o_ref.dtype)


def _project(x_bf16, w_bf16, *, tm):
    n_pad, c_in = x_bf16.shape
    c_out = w_bf16.shape[1]
    assert n_pad % tm == 0
    return pl.pallas_call(
        project_kernel,
        out_shape=jax.ShapeDtypeStruct((n_pad, c_out), jnp.bfloat16),
        grid_spec=pltpu.PrefetchScalarGridSpec(
            num_scalar_prefetch=0,
            grid=(n_pad // tm,),
            in_specs=[
                pl.BlockSpec((tm, c_in), lambda i: (i, 0)),
                pl.BlockSpec((c_in, c_out), lambda i: (0, 0)),  # W resident
            ],
            out_specs=pl.BlockSpec((tm, c_out), lambda i: (i, 0)),
        ),
        compiler_params=pltpu.CompilerParams(
            dimension_semantics=("parallel",),
            vmem_limit_bytes=32 * 1024 * 1024,
        ),
        cost_estimate=pl.CostEstimate(
            flops=int(2 * n_pad * c_in * c_out),
            transcendentals=0,
            bytes_accessed=int(
                n_pad * c_in * 2 + c_in * c_out * 2 + n_pad * c_out * 2
            ),
        ),
    )(x_bf16, w_bf16)


# ---------------------------------------------------------------------------
# Kernel 2: aggregation  out = act(A_norm @ XW + b)   (HBM-bound A stream)
# ---------------------------------------------------------------------------
def gcn_agg_kernel(a_ref, xw_ref, b_ref, o_ref, acc_ref, *, apply_relu, tk,
                   xw_resident):
    k = pl.program_id(1)

    @pl.when(k == 0)
    def _():
        acc_ref[...] = jnp.zeros_like(acc_ref)

    if xw_resident:
        # XW is the full resident array; slice this k-slab in VMEM.
        row0 = pl.multiple_of(k * tk, tk)
        xw = xw_ref[pl.ds(row0, tk), :]
    else:
        xw = xw_ref[...]

    # Heavy message-passing matmul: bf16 A tile x bf16 projected features,
    # f32 accumulation on the MXU.
    acc_ref[...] += jnp.dot(a_ref[...], xw, preferred_element_type=jnp.float32)

    @pl.when(k == pl.num_programs(1) - 1)
    def _():
        y = acc_ref[...] + b_ref[...]          # f32 bias add
        if apply_relu:
            y = jnp.maximum(y, 0.0)            # f32 ReLU (v5e-friendly)
        o_ref[...] = y.astype(o_ref.dtype)     # lane-dense 128-wide store


def _gcn_aggregate(a_bf16, xw_bf16, b, *, apply_relu, tm, tk, out_dtype):
    n_pad = a_bf16.shape[0]
    c_out = xw_bf16.shape[1]
    assert n_pad % tm == 0 and n_pad % tk == 0, "grid would truncate"
    grid = (n_pad // tm, n_pad // tk)

    xw_bytes = n_pad * c_out * 2
    xw_resident = xw_bytes <= _XW_RESIDENT_BYTES
    if xw_resident:
        xw_spec = pl.BlockSpec((n_pad, c_out), lambda i, k: (0, 0))  # resident
        xw_traffic = xw_bytes
    else:
        # Fallback: stream the k-th XW slab per step (re-read per row tile).
        # TODO(synk): fuse the projection back into this kernel for graphs too
        # large for XW residency instead of re-streaming slabs.
        xw_spec = pl.BlockSpec((tk, c_out), lambda i, k: (k, 0))
        xw_traffic = xw_bytes * grid[0]

    out_itemsize = jnp.dtype(out_dtype).itemsize
    bytes_accessed = (
        n_pad * n_pad * 2            # bf16 A stream (dominant)
        + xw_traffic                 # projected features
        + c_out * 4                  # bias (resident)
        + n_pad * c_out * out_itemsize
    )

    return pl.pallas_call(
        functools.partial(
            gcn_agg_kernel, apply_relu=apply_relu, tk=tk, xw_resident=xw_resident
        ),
        out_shape=jax.ShapeDtypeStruct((n_pad, c_out), out_dtype),
        grid_spec=pltpu.PrefetchScalarGridSpec(
            num_scalar_prefetch=0,
            grid=grid,
            in_specs=[
                pl.BlockSpec((tm, tk), lambda i, k: (i, k)),       # A tile
                xw_spec,                                           # XW
                pl.BlockSpec((1, c_out), lambda i, k: (0, 0)),     # bias
            ],
            out_specs=pl.BlockSpec((tm, c_out), lambda i, k: (i, 0)),
            scratch_shapes=[pltpu.VMEM((tm, c_out), jnp.float32)],
        ),
        compiler_params=pltpu.CompilerParams(
            # Row tiles independent -> megacore-shardable; k is the reduction.
            dimension_semantics=("parallel", "arbitrary"),
            # Worst case here: 2x(512x2048 bf16) A tiles + 2x8 MiB resident XW
            # + out/acc blocks ~= 22 MiB, under v7x's 64 MiB physical VMEM.
            vmem_limit_bytes=48 * 1024 * 1024,
        ),
        cost_estimate=pl.CostEstimate(
            flops=int(2 * n_pad * n_pad * c_out),
            transcendentals=0,
            bytes_accessed=int(bytes_accessed),
        ),
    )(a_bf16, xw_bf16, b)


# ---------------------------------------------------------------------------
# Tile plan + forward
# ---------------------------------------------------------------------------
def _tile_plan(n, tm=None, tk=None):
    n128 = _round_up(max(int(n), 1), 128)
    if tm is None:
        tm = min(512, n128)
    if tk is None:
        # Rectangular tiles: large tk amortizes per-grid-step overhead and the
        # accumulator read-modify-write over long contiguous A DMA bursts.
        tk = min(2048, _round_up(n128, tm))
    assert tm % 128 == 0 and tk % 128 == 0
    lcm = tm * tk // math.gcd(tm, tk)
    n_pad = _round_up(n128, lcm)
    return tm, tk, n_pad


def gnn_forward(a_norm, x, w1, b1, w2, b2, *, tm=None, tk=None):
    """Two-layer GCN forward; returns [N, out_channels] float32."""
    n, in_c = x.shape
    hid_c = w1.shape[1]
    out_c = w2.shape[1]

    tm, tk, n_pad = _tile_plan(n, tm, tk)
    hid_pad = _round_up(hid_c, 128)   # lane-dense hidden activations
    out_pad = _round_up(out_c, 128)   # lane-dense output stores

    def pad2(arr, shape, dtype):
        arr = jnp.asarray(arr)
        if arr.ndim == 1:
            arr = arr.reshape(1, -1)
        return jnp.pad(
            arr, [(0, s - d) for s, d in zip(shape, arr.shape)]
        ).astype(dtype)

    a_bf16 = pad2(a_norm, (n_pad, n_pad), jnp.bfloat16)
    x_p = pad2(x, (n_pad, in_c), jnp.bfloat16)
    w1_p = pad2(w1, (in_c, hid_pad), jnp.bfloat16)
    b1_p = pad2(b1, (1, hid_pad), jnp.float32)
    w2_p = pad2(w2, (hid_pad, out_pad), jnp.bfloat16)
    b2_p = pad2(b2, (1, out_pad), jnp.float32)

    # Layer 1: h = relu(A @ (X W1) + b1)   (h emitted bf16 for layer 2)
    xw1 = _project(x_p, w1_p, tm=tm)
    h = _gcn_aggregate(a_bf16, xw1, b1_p, apply_relu=True, tm=tm, tk=tk,
                       out_dtype=jnp.bfloat16)
    # Layer 2: out = A @ (h W2) + b2
    xw2 = _project(h, w2_p, tm=tm)
    out = _gcn_aggregate(a_bf16, xw2, b2_p, apply_relu=False, tm=tm, tk=tk,
                         out_dtype=jnp.float32)
    return out[:n, :out_c]


def build_gcn_norm_adj(edge_index, num_nodes):
    """Dense symmetric-normalized adjacency with self loops (GCNConv default)."""
    src, dst = edge_index
    a = jnp.zeros((num_nodes, num_nodes), jnp.float32)
    # message j -> i: row = target, col = source; duplicate edges sum (PyG parity)
    a = a.at[dst, src].add(1.0)
    # add_remaining_self_loops: weight-1 self loop only where one is missing
    idx = jnp.arange(num_nodes)
    diag = a[idx, idx]
    a = a.at[idx, idx].set(jnp.where(diag > 0, diag, 1.0))
    deg = a.sum(axis=1)
    dinv = jnp.where(deg > 0, 1.0 / jnp.sqrt(deg), 0.0)
    return dinv[:, None] * a * dinv[None, :]


def reference_forward(a_norm, x, w1, b1, w2, b2):
    h = jnp.maximum(a_norm @ (x @ w1) + b1, 0.0)
    return a_norm @ (h @ w2) + b2


if __name__ == "__main__":
    # Small deterministic problem: 512 nodes, 8 in-channels, 32 hidden, 8 out.
    # Explicit tm=128, tk=256 -> grid (4, 2): exercises rectangular tiles, the
    # k-axis accumulation, the parallel row axis, and resident-XW pl.ds slicing.
    N, IN_C, HID_C, OUT_C, E = 512, 8, 32, 8, 2048

    key = jax.random.PRNGKey(0)
    k_src, k_dst, k_x, k_w1, k_w2 = jax.random.split(key, 5)

    # Synthetic deterministic edge_index (stand-in for edges.csv).
    src = jax.random.randint(k_src, (E,), 0, N)
    dst = jax.random.randint(k_dst, (E,), 0, N)
    edge_index = jnp.stack([src, dst], axis=0)

    a_norm = build_gcn_norm_adj(edge_index, N)

    # Node features [N, IN_C]
    x = jax.random.normal(k_x, (N, IN_C), jnp.float32)

    # Deterministic parameter init (GCNConv: Linear weight + bias per layer).
    w1 = jax.random.normal(k_w1, (IN_C, HID_C), jnp.float32) * (1.0 / jnp.sqrt(IN_C))
    b1 = jnp.zeros((1, HID_C), jnp.float32) + 0.01
    w2 = jax.random.normal(k_w2, (HID_C, OUT_C), jnp.float32) * (1.0 / jnp.sqrt(HID_C))
    b2 = jnp.zeros((1, OUT_C), jnp.float32) - 0.01

    out = jax.block_until_ready(
        gnn_forward(a_norm, x, w1, b1, w2, b2, tm=128, tk=256)
    )

    ref = reference_forward(a_norm, x, w1, b1, w2, b2)
    assert out.shape == (N, OUT_C)
    # A_norm, X, W and the layer-1 activation run through the MXU in bf16 (f32
    # accumulation), so compare against the f32 reference at bf16 tolerance.
    assert jnp.allclose(out, ref, atol=3e-2, rtol=3e-2), float(
        jnp.max(jnp.abs(out - ref))
    )

    print("KERNEL_OK")
</pallas_src>

<mosaic_0001>
module attributes {stable_mosaic.version = 11 : i64} {
  func.func @project_kernel(%arg0: i32, %arg1: memref<128x8xbf16, #tpu.memory_space<vmem>>, %arg2: memref<8x128xbf16, #tpu.memory_space<vmem>>, %arg3: memref<128x128xbf16, #tpu.memory_space<vmem>>) attributes {dimension_semantics = [#tpu.dimension_semantics<parallel>], iteration_bounds = array<i64: 4>, scalar_prefetch = 0 : i64, scratch_operands = 0 : i64, tpu.core_type = #tpu.core_type<tc>, window_params = [{transform_indices = @transform_0, window_bounds = array<i64: 128, 8>}, {pipeline_mode = #tpu.pipeline_mode<synchronous>, transform_indices = @transform_1, window_bounds = array<i64: 8, 128>}, {transform_indices = @transform_2, window_bounds = array<i64: 128, 128>}]} {
    %c0 = arith.constant 0 : index
    %c0_0 = arith.constant 0 : index
    %0 = vector.load %arg1[%c0, %c0_0] : memref<128x8xbf16, #tpu.memory_space<vmem>>, vector<128x8xbf16>
    %c0_1 = arith.constant 0 : index
    %c0_2 = arith.constant 0 : index
    %1 = vector.load %arg2[%c0_1, %c0_2] : memref<8x128xbf16, #tpu.memory_space<vmem>>, vector<8x128xbf16>
    %cst = arith.constant dense<0.000000e+00> : vector<128x128xf32>
    %2 = tpu.matmul %0, %1, %cst {dimension_numbers = #tpu.dot_dimension_numbers<[1], [0], [0], [1], [0, 0, 1, 1], [], []>} : vector<128x8xbf16>, vector<8x128xbf16>, vector<128x128xf32> -> vector<128x128xf32>
    %3 = arith.truncf %2 : vector<128x128xf32> to vector<128x128xbf16>
    %c0_3 = arith.constant 0 : index
    %c0_4 = arith.constant 0 : index
    %4 = vector.load %arg3[%c0_3, %c0_4] : memref<128x128xbf16, #tpu.memory_space<vmem>>, vector<128x128xbf16>
    tpu.vector_store %arg3[%c0_3, %c0_4], %3 {strides = array<i32>} : memref<128x128xbf16, #tpu.memory_space<vmem>>, vector<128x128xbf16>,
    return
  }
  func.func @transform_0(%arg0: i32) -> (i32, i32) {
    %c0_i32 = arith.constant 0 : i32
    %c0_i32_0 = arith.constant 0 : i32
    return %arg0, %c0_i32 : i32, i32
  }
  func.func @transform_1(%arg0: i32) -> (i32, i32) {
    %c0_i32 = arith.constant 0 : i32
    %c0_i32_0 = arith.constant 0 : i32
    %c0_i32_1 = arith.constant 0 : i32
    return %c0_i32, %c0_i32_0 : i32, i32
  }
  func.func @transform_2(%arg0: i32) -> (i32, i32) {
    %c0_i32 = arith.constant 0 : i32
    %c0_i32_0 = arith.constant 0 : i32
    return %arg0, %c0_i32 : i32, i32
  }
}

</mosaic_0001>

<llo_original>
// kernel: tpu_custom_call.1
$region0: #{tpu_custom_call.1}
  #allocation0 [shape = 'u32[]', space=smem, size = 0x4, offset = 0x4, fixed_abs, tag = 'smem constant byte address 0x4 - core index']
  #allocation1 [shape = 'u32[144,128]{1,0:T(1,128)}', space=vmem, size = 0x12000, scoped, tag = 'internal scratch']
  %s0 = inlined_call_operand.vmem [shape: bf16[512,8], index: 0, kind: input, shape index: {}]
  %s1 = inlined_call_operand.vmem [shape: bf16[8,128], index: 1, kind: input, shape index: {}]
  %s2 = inlined_call_operand.hbm [shape: bf16[512,128], index: 2, kind: output, shape index: {}]
  %s3 = sld [smem:[#allocation0]]
  $region41: #{tpu_custom_call.1} parent=0
    _
  %s5 = ssub.s32 1, %s3
  %s6 = scalar_select 0, %s5, %s3
  $region1: #{tpu_custom_call.1} parent=0
    #allocation2 [shape = 'u8[65536]{0}', space=vmem, size = 0x10000, scoped, tag = 'output window, operand 0']
    #allocation3 [shape = 's32[2]{0}', space=sflag, size = 0x8, scoped, tag = 'scoped memory for tpu_custom_call.1']
    %7 = vsyncpa [#allocation3], 0
    %s8 = scalar_lea.sflag [#allocation3], 1
    %9 = vsyncpa %s8, 0
    loop: start=0, step=1, limit=6
    $region2: #{tpu_custom_call.1} parent=1 // loop_pre_header
      _
    $region3: #{tpu_custom_call.1} parent=1 // loop_header
      %s11 = sphi 0, %s15
      %p12 = scmp.ge.s32.totalorder %s11, 6
      %s21 = sphi 0, %s23
      %s24 = sphi 0, %s21
      %s25 = sphi 0, %s24
      %s41 = sphi 0, %s25
      %s45 = sphi 0, %s45
      %s47 = sphi 0, %s45
      %s48 = sphi 0, %s47
      %s62 = sphi 0, %s48
      %s68 = sphi 0, %s70
      %s71 = sphi 0, %s68
      %s72 = sphi 0, %s71
      %s88 = sphi 0, %s72
    $region4: #{tpu_custom_call.1} parent=1 // loop_header_branch
      %14 = sbr.rel (%p12) target = $region8
    $region5: #{tpu_custom_call.1} parent=1 // loop_body
      %s16 = ssub.s32 %s11, 1
      %s17 = ssub.s32 %s11, 2
      %s18 = sadd.s32 %s11, 1
      %s19 = ssub.s32 %s11, %s18
      %p20 = scmp.eq.s32.totalorder %s19, 0
      %s22 = sadd.s32 %s21, 1
      %s23 = scalar_select %p20, %s21, %s22
      %p26 = pneg %p20
      %p27 = scmp.eq.s32.totalorder %s11, 3
      %p28 = por %p26, %p27
      %p29 = scmp.ne.s32.totalorder %s21, %s24
      %p30 = scmp.eq.s32.totalorder %s11, 0
      %p31 = por %p29, %p30
      %p32 = scmp.ne.s32.totalorder %s21, %s24
      %p33 = scmp.eq.s32.totalorder %s16, 3
      %p34 = por %p32, %p33
      %p35 = scmp.ne.s32.totalorder %s24, %s25
      %p36 = scmp.eq.s32.totalorder %s16, 0
      %p37 = por %p35, %p36
      %p38 = scmp.ne.s32.totalorder %s24, %s25
      %p39 = scmp.eq.s32.totalorder %s17, 3
      %p40 = por %p38, %p39
      %p42 = scmp.ne.s32.totalorder %s25, %s41
      %p43 = scmp.eq.s32.totalorder %s17, 0
      %p44 = por %p42, %p43
      %s46 = sadd.s32 %s45, 1
      %p49 = scmp.eq.s32.totalorder %s11, 3
      %p50 = scmp.ne.s32.totalorder %s45, %s47
      %p51 = scmp.eq.s32.totalorder %s11, 0
      %p52 = por %p50, %p51
      %p53 = scmp.ne.s32.totalorder %s45, %s47
      %p54 = scmp.eq.s32.totalorder %s16, 3
      %p55 = por %p53, %p54
      %p56 = scmp.ne.s32.totalorder %s47, %s48
      %p57 = scmp.eq.s32.totalorder %s16, 0
      %p58 = por %p56, %p57
      %p59 = scmp.ne.s32.totalorder %s47, %s48
      %p60 = scmp.eq.s32.totalorder %s17, 3
      %p61 = por %p59, %p60
      %p63 = scmp.ne.s32.totalorder %s48, %s62
      %p64 = scmp.eq.s32.totalorder %s17, 0
      %p65 = por %p63, %p64
      %s66 = ssub.s32 %s11, %s18
      %p67 = scmp.eq.s32.totalorder %s66, 0
      %s69 = sadd.s32 %s68, 1
      %s70 = scalar_select %p67, %s68, %s69
      %p73 = pneg %p67
      %p74 = scmp.eq.s32.totalorder %s11, 3
      %p75 = por %p73, %p74
      %p76 = scmp.ne.s32.totalorder %s68, %s71
      %p77 = scmp.eq.s32.totalorder %s11, 0
      %p78 = por %p76, %p77
      %p79 = scmp.ne.s32.totalorder %s68, %s71
      %p80 = scmp.eq.s32.totalorder %s16, 3
      %p81 = por %p79, %p80
      %p82 = scmp.ne.s32.totalorder %s71, %s72
      %p83 = scmp.eq.s32.totalorder %s16, 0
      %p84 = por %p82, %p83
      %p85 = scmp.ne.s32.totalorder %s71, %s72
      %p86 = scmp.eq.s32.totalorder %s17, 3
      %p87 = por %p85, %p86
      %p89 = scmp.ne.s32.totalorder %s72, %s88
      %p90 = scmp.eq.s32.totalorder %s17, 0
      %p91 = por %p89, %p90
      %p92 = scmp.le.s32.totalorder 1, %s11
      %p93 = scmp.lt.s32.totalorder %s11, 5
      %p94 = pnand %p92, %p93
      %p95 = pneg %p94
      // Predicated region
      $region9: #{tpu_custom_call.1} parent=5 // pred_check
        _
      $region10: #{tpu_custom_call.1} parent=5 // pred_check_branch
        %97 = sbr.rel (%p94) target = $region12
      $region11: #{tpu_custom_call.1} parent=5 // pred_region
        %s98 = ssub.s32 %s11, 1
        // Predicated region
        $region13: #{tpu_custom_call.1} parent=11 // pred_check
          %p99 = pneg %p58
        $region14: #{tpu_custom_call.1} parent=11 // pred_check_branch
          %101 = sbr.rel (%p99) target = $region16
        $region15: #{tpu_custom_call.1} parent=11 // pred_region
          _
        $region16: #{tpu_custom_call.1} parent=11 // pred_fallthru
          _
      $region12: #{tpu_custom_call.1} parent=5 // pred_fallthru
        _
      %p102 = scmp.lt.s32.totalorder %s11, 4
      // Predicated region
      $region17: #{tpu_custom_call.1} parent=5 // pred_check
        %p103 = pneg %p102
      $region18: #{tpu_custom_call.1} parent=5 // pred_check_branch
        %105 = sbr.rel (%p103) target = $region20
      $region19: #{tpu_custom_call.1} parent=5 // pred_region
        // Predicated region
        $region21: #{tpu_custom_call.1} parent=19 // pred_check
          %p106 = pneg %p31
        $region22: #{tpu_custom_call.1} parent=19 // pred_check_branch
          %108 = sbr.rel (%p106) target = $region24
        $region23: #{tpu_custom_call.1} parent=19 // pred_region
          %s109 = smul.u32 16, %s11
          %p110 = scmp.lt.s32.totalorder %s109, 63
          %s111 = scalar_select %p110, %s109, 63
          %s112 = smul.addr %s111, 4
          %s113 = scalar_lea.vmem %s0, %s112
          %s114 = smul.u32 16, %s11
        $region24: #{tpu_custom_call.1} parent=19 // pred_fallthru
          _
      $region20: #{tpu_custom_call.1} parent=5 // pred_fallthru
        _
      %p115 = scmp.le.s32.totalorder 1, %s11
      %p116 = scmp.lt.s32.totalorder %s11, 5
      %p117 = pnand %p115, %p116
      %p118 = pneg %p117
      // Predicated region
      $region25: #{tpu_custom_call.1} parent=5 // pred_check
        _
      $region26: #{tpu_custom_call.1} parent=5 // pred_check_branch
        %120 = sbr.rel (%p117) target = $region28
      $region27: #{tpu_custom_call.1} parent=5 // pred_region
        %s121 = ssub.s32 %s11, 1
        %s122 = smul.u32 16, %s16
        %p123 = scmp.lt.s32.totalorder %s122, 63
        %s124 = scalar_select %p123, %s122, 63
        %s125 = smul.addr %s124, 4
        %s126 = scalar_lea.vmem %s0, %s125
        %p127 = pneg %p37
        %p128 = pneg %p34
        %p129 = pneg %p58
        %p130 = pneg %p55
        %p131 = pneg %p84
        %p132 = pneg %p81
        %s133 = sand.u32 %s71, 1
        %s134 = scalar_lea.sflag [#allocation3], %s133
        %s135 = sand.u32 %s71, 1
        %s136 = smul.addr %s135, 64
        %s137 = scalar_lea.vmem [#allocation2], %s136
        %s138 = smul.u32 16, %s16
        %p139 = scmp.lt.s32.totalorder %s138, 63
        %s140 = scalar_select %p139, %s138, 63
        %s141 = smul.addr %s140, 4
        %s142 = scalar_lea.vmem %s0, %s141
        %s143 = smul.u32 16, %s16
        %s144 = smul.u32 16, %s16
        %v146 = vld [vmem:[%s142] sm:$0xf]
        %v147 = vld [vmem:[%s142 + $0x4] sm:$0xf]
        %v148 = vld [vmem:[%s142 + $0x8] sm:$0xf]
        %v149 = vld [vmem:[%s142 + $0xc] sm:$0xf]
        %v150 = vld [vmem:[%s142 + $0x10] sm:$0xf]
        %v151 = vld [vmem:[%s142 + $0x14] sm:$0xf]
        %v152 = vld [vmem:[%s142 + $0x18] sm:$0xf]
        %v153 = vld [vmem:[%s142 + $0x1c] sm:$0xf]
        %v154 = vld [vmem:[%s142 + $0x20] sm:$0xf]
        %v155 = vld [vmem:[%s142 + $0x24] sm:$0xf]
        %v156 = vld [vmem:[%s142 + $0x28] sm:$0xf]
        %v157 = vld [vmem:[%s142 + $0x2c] sm:$0xf]
        %v158 = vld [vmem:[%s142 + $0x30] sm:$0xf]
        %v159 = vld [vmem:[%s142 + $0x34] sm:$0xf]
        %v160 = vld [vmem:[%s142 + $0x38] sm:$0xf]
        %v161 = vld [vmem:[%s142 + $0x3c] sm:$0xf]
        %v162 = vld [vmem:[%s1] sm:$0xf]
        %v179 = vunpack.c.l.b16 %v146
        %v180 = vunpack.c.l.b16 %v147
        %v181 = vunpack.c.l.b16 %v148
        %v182 = vunpack.c.l.b16 %v149
        %v183 = vunpack.c.l.b16 %v150
        %v184 = vunpack.c.l.b16 %v151
        %v185 = vunpack.c.l.b16 %v152
        %v186 = vunpack.c.l.b16 %v153
        %v187 = vunpack.c.l.b16 %v154
        %v188 = vunpack.c.l.b16 %v155
        %v189 = vunpack.c.l.b16 %v156
        %v190 = vunpack.c.l.b16 %v157
        %v191 = vunpack.c.l.b16 %v158
        %v192 = vunpack.c.l.b16 %v159
        %v193 = vunpack.c.l.b16 %v160
        %v194 = vunpack.c.l.b16 %v161
        %v195 = vpack.c.b16 %v180, %v179
        %v196 = vpack.c.b16 %v182, %v181
        %v197 = vpack.c.b16 %v184, %v183
        %v198 = vpack.c.b16 %v186, %v185
        %v199 = vpack.c.b16 %v188, %v187
        %v200 = vpack.c.b16 %v190, %v189
        %v201 = vpack.c.b16 %v192, %v191
        %v202 = vpack.c.b16 %v194, %v193
        %vm203 = vcmask 64512
        %v205 = vsel %vm203, %v195, 0
        %v208 = vsel %vm203, %v196, 0
        %v211 = vsel %vm203, %v197, 0
        %v214 = vsel %vm203, %v198, 0
        %v217 = vsel %vm203, %v199, 0
        %v220 = vsel %vm203, %v200, 0
        %v223 = vsel %vm203, %v201, 0
        %v226 = vsel %vm203, %v202, 0
        %vm228 = vcmask 1043456
        %v230 = vsel %vm228, %v162, 0
        %232 = vmatprep.subr.bf16.mxu0 0
        %233 = vmatpush1.bf16.msra.mxu0 %v230
        %234 = vmatprep.subr.bf16.mxu0 0
        %235 = vmatpush1.bf16.msra.mxu0 0
        %236 = vmatprep.subr.bf16.mxu0 0
        %237 = vmatpush1.bf16.msra.mxu0 0
        %238 = vmatprep.subr.bf16.mxu0 0
        %239 = vmatpush1.bf16.msra.mxu0 0
        %240 = vmatprep.subr.bf16.mxu0 0
        %241 = vmatpush1.bf16.msra.mxu0 0
        %242 = vmatprep.subr.bf16.mxu0 0
        %243 = vmatpush1.bf16.msra.mxu0 0
        %244 = vmatprep.subr.bf16.mxu0 0
        %245 = vmatpush1.bf16.msra.mxu0 0
        %246 = vmatprep.subr.bf16.mxu0 0
        %247 = vmatpush1.bf16.msra.mxu0 0
        %248 = vmatprep.subr.bf16.mxu0 0
        %249 = vmatpush1.bf16.msra.mxu0 0
        %250 = vmatprep.subr.bf16.mxu0 0
        %251 = vmatpush1.bf16.msra.mxu0 0
        %252 = vmatprep.subr.bf16.mxu0 0
        %253 = vmatpush1.bf16.msra.mxu0 0
        %254 = vmatprep.subr.bf16.mxu0 0
        %255 = vmatpush1.bf16.msra.mxu0 0
        %256 = vmatprep.subr.bf16.mxu0 0
        %257 = vmatpush1.bf16.msra.mxu0 0
        %258 = vmatprep.subr.bf16.mxu0 0
        %259 = vmatpush1.bf16.msra.mxu0 0
        %260 = vmatprep.subr.bf16.mxu0 0
        %261 = vmatpush1.bf16.msra.mxu0 0
        %262 = vmatprep.subr.bf16.mxu0 0
        %263 = vmatpush1.bf16.msra.mxu0 0
        %264 = vmatprep.mubr.bf16.mxu0 0
        %265 = vmatmul.mubr.bf16.gmra.mrb[0].mxu0 %v205
        %v266 = vpop.f32.mrb[0].mxu0
        %v267 = vadd.f32 0.0, %v266
        %v268 = vpop.f32.mrb[0].mxu0
        %v269 = vpop.f32.mrb[0].mxu0
        %v270 = vadd.f32 0.0, %v269
        %v271 = vpop.f32.mrb[0].mxu0
        %272 = vmatprep.mubr.bf16.mxu0 0
        %273 = vmatmul.mubr.bf16.gmra.mrb[0].mxu0 %v208
        %v274 = vpop.f32.mrb[0].mxu0
        %v275 = vadd.f32 0.0, %v274
        %v276 = vpop.f32.mrb[0].mxu0
        %v277 = vpop.f32.mrb[0].mxu0
        %v278 = vadd.f32 0.0, %v277
        %v279 = vpop.f32.mrb[0].mxu0
        %280 = vmatprep.mubr.bf16.mxu0 0
        %281 = vmatmul.mubr.bf16.gmra.mrb[0].mxu0 %v211
        %v282 = vpop.f32.mrb[0].mxu0
        %v283 = vadd.f32 0.0, %v282
        %v284 = vpop.f32.mrb[0].mxu0
        %v285 = vpop.f32.mrb[0].mxu0
        %v286 = vadd.f32 0.0, %v285
        %v287 = vpop.f32.mrb[0].mxu0
        %288 = vmatprep.mubr.bf16.mxu0 0
        %289 = vmatmul.mubr.bf16.gmra.mrb[0].mxu0 %v214
        %v290 = vpop.f32.mrb[0].mxu0
        %v291 = vadd.f32 0.0, %v290
        %v292 = vpop.f32.mrb[0].mxu0
        %v293 = vpop.f32.mrb[0].mxu0
        %v294 = vadd.f32 0.0, %v293
        %v295 = vpop.f32.mrb[0].mxu0
        %296 = vmatprep.mubr.bf16.mxu0 0
        %297 = vmatmul.mubr.bf16.gmra.mrb[0].mxu0 %v217
        %v298 = vpop.f32.mrb[0].mxu0
        %v299 = vadd.f32 0.0, %v298
        %v300 = vpop.f32.mrb[0].mxu0
        %v301 = vpop.f32.mrb[0].mxu0
        %v302 = vadd.f32 0.0, %v301
        %v303 = vpop.f32.mrb[0].mxu0
        %304 = vmatprep.mubr.bf16.mxu0 0
        %305 = vmatmul.mubr.bf16.gmra.mrb[0].mxu0 %v220
        %v306 = vpop.f32.mrb[0].mxu0
        %v307 = vadd.f32 0.0, %v306
        %v308 = vpop.f32.mrb[0].mxu0
        %v309 = vpop.f32.mrb[0].mxu0
        %v310 = vadd.f32 0.0, %v309
        %v311 = vpop.f32.mrb[0].mxu0
        %312 = vmatprep.mubr.bf16.mxu0 0
        %313 = vmatmul.mubr.bf16.gmra.mrb[0].mxu0 %v223
        %v314 = vpop.f32.mrb[0].mxu0
        %v315 = vadd.f32 0.0, %v314
        %v316 = vpop.f32.mrb[0].mxu0
        %v317 = vpop.f32.mrb[0].mxu0
        %v318 = vadd.f32 0.0, %v317
        %v319 = vpop.f32.mrb[0].mxu0
        %320 = vmatprep.mubr.bf16.mxu0 0
        %321 = vmatmul.mubr.bf16.gmra.mrb[0].mxu0 %v226
        %v322 = vpop.f32.mrb[0].mxu0
        %v323 = vadd.f32 0.0, %v322
        %v324 = vpop.f32.mrb[0].mxu0
        %v325 = vpop.f32.mrb[0].mxu0
        %v326 = vadd.f32 0.0, %v325
        %v327 = vpop.f32.mrb[0].mxu0
        %328 = vdwg.mxu0
        %v329 = vpack.c.bf16 %v270, %v267
        %v330 = vpack.c.bf16 %v278, %v275
        %v331 = vpack.c.bf16 %v286, %v283
        %v332 = vpack.c.bf16 %v294, %v291
        %v333 = vpack.c.bf16 %v302, %v299
        %v334 = vpack.c.bf16 %v310, %v307
        %v335 = vpack.c.bf16 %v318, %v315
        %v336 = vpack.c.bf16 %v326, %v323
        %v345 = vunpack.c.l.b16 %v329
        %v346 = vunpack.c.h.b16 %v329
        %v347 = vunpack.c.l.b16 %v330
        %v348 = vunpack.c.h.b16 %v330
        %v349 = vunpack.c.l.b16 %v331
        %v350 = vunpack.c.h.b16 %v331
        %v351 = vunpack.c.l.b16 %v332
        %v352 = vunpack.c.h.b16 %v332
        %v353 = vunpack.c.l.b16 %v333
        %v354 = vunpack.c.h.b16 %v333
        %v355 = vunpack.c.l.b16 %v334
        %v356 = vunpack.c.h.b16 %v334
        %v357 = vunpack.c.l.b16 %v335
        %v358 = vunpack.c.h.b16 %v335
        %v359 = vunpack.c.l.b16 %v336
        %v360 = vunpack.c.h.b16 %v336
        %v361 = vpack.c.b16 %v345, %v345
        %v362 = vpack.c.b16 %v346, %v346
        %v363 = vpack.c.b16 %v347, %v347
        %v364 = vpack.c.b16 %v348, %v348
        %v365 = vpack.c.b16 %v349, %v349
        %v366 = vpack.c.b16 %v350, %v350
        %v367 = vpack.c.b16 %v351, %v351
        %v368 = vpack.c.b16 %v352, %v352
        %v369 = vpack.c.b16 %v353, %v353
        %v370 = vpack.c.b16 %v354, %v354
        %v371 = vpack.c.b16 %v355, %v355
        %v372 = vpack.c.b16 %v356, %v356
        %v373 = vpack.c.b16 %v357, %v357
        %v374 = vpack.c.b16 %v358, %v358
        %v375 = vpack.c.b16 %v359, %v359
        %v376 = vpack.c.b16 %v360, %v360
        %393 = vst [vmem:[%s137] sm:$0xf] %v361
        %394 = vst [vmem:[%s137 + $0x4] sm:$0xf] %v362
        %395 = vst [vmem:[%s137 + $0x8] sm:$0xf] %v363
        %396 = vst [vmem:[%s137 + $0xc] sm:$0xf] %v364
        %397 = vst [vmem:[%s137 + $0x10] sm:$0xf] %v365
        %398 = vst [vmem:[%s137 + $0x14] sm:$0xf] %v366
        %399 = vst [vmem:[%s137 + $0x18] sm:$0xf] %v367
        %400 = vst [vmem:[%s137 + $0x1c] sm:$0xf] %v368
        %401 = vst [vmem:[%s137 + $0x20] sm:$0xf] %v369
        %402 = vst [vmem:[%s137 + $0x24] sm:$0xf] %v370
        %403 = vst [vmem:[%s137 + $0x28] sm:$0xf] %v371
        %404 = vst [vmem:[%s137 + $0x2c] sm:$0xf] %v372
        %405 = vst [vmem:[%s137 + $0x30] sm:$0xf] %v373
        %406 = vst [vmem:[%s137 + $0x34] sm:$0xf] %v374
        %407 = vst [vmem:[%s137 + $0x38] sm:$0xf] %v375
        %408 = vst [vmem:[%s137 + $0x3c] sm:$0xf] %v376
        %s409 = sand.u32 %s71, 1
        %s410 = scalar_lea.sflag [#allocation3], %s409
        %s411 = sand.u32 %s71, 1
        %s412 = smul.addr %s411, 64
        %s413 = scalar_lea.vmem [#allocation2], %s412
        // Predicated region
        $region29: #{tpu_custom_call.1} parent=27 // pred_check
          %p414 = pneg %p81
        $region30: #{tpu_custom_call.1} parent=27 // pred_check_branch
          %416 = sbr.rel (%p414) target = $region32
        $region31: #{tpu_custom_call.1} parent=27 // pred_region
          %s417 = smul.u32 16, %s16
          %s419 = ssub.s32 1024, 1024
          %420 = vsyncadd %s410, %s419
          %s421 = smul.addr %s417, 64
          %s422 = scalar_lea.hbm %s2, %s421
          %s423 = sshll.u32 %s413, 4
          %s424 = int_to_ptr.vmem [resolvable:$true] %s423
          %429 = dma.vmem_to_hbm [thread:$0]  %s424, 1024, %s422, %s410, 64, 64, 4
        $region32: #{tpu_custom_call.1} parent=27 // pred_fallthru
          _
      $region28: #{tpu_custom_call.1} parent=5 // pred_fallthru
        _
      %p430 = scmp.le.s32.totalorder 2, %s11
      // Predicated region
      $region33: #{tpu_custom_call.1} parent=5 // pred_check
        %p431 = pneg %p430
      $region34: #{tpu_custom_call.1} parent=5 // pred_check_branch
        %433 = sbr.rel (%p431) target = $region36
      $region35: #{tpu_custom_call.1} parent=5 // pred_region
        %s434 = ssub.s32 %s11, 2
        // Predicated region
        $region37: #{tpu_custom_call.1} parent=35 // pred_check
          %p435 = pneg %p87
        $region38: #{tpu_custom_call.1} parent=35 // pred_check_branch
          %437 = sbr.rel (%p435) target = $region40
        $region39: #{tpu_custom_call.1} parent=35 // pred_region
          %s438 = sand.u32 %s72, 1
          %s439 = scalar_lea.sflag [#allocation3], %s438
          %s440 = sand.u32 %s72, 1
          %s441 = smul.addr %s440, 64
          %s442 = scalar_lea.vmem [#allocation2], %s441
          %443 = dma.done %s439, 1024
        $region40: #{tpu_custom_call.1} parent=35 // pred_fallthru
          _
      $region36: #{tpu_custom_call.1} parent=5 // pred_fallthru
        _
    $region6: #{tpu_custom_call.1} parent=1 // loop_footer
      %s15 = sadd.s32 1, %s11
    $region7: #{tpu_custom_call.1} parent=1 // loop_footer_branch
      %10 = sbr.rel target = $region3
    $region8: #{tpu_custom_call.1} parent=1 // loop_exit
      _
    %444 = vsyncpa [#allocation3], 1
    %s445 = scalar_lea.sflag [#allocation3], 1
    %446 = vsyncpa %s445, 1

</llo_original>
